<compile_context>
chip_gen: v7x
topology: tpu7x:2x2x1
jax: 0.10.0
libtpu: 0.0.40
codegen_flags: <defaults>
</compile_context>

<pallas_src>
import jax
import jax.numpy as jnp
from jax.experimental import pallas as pl
from jax.experimental.pallas import tpu as pltpu

LANE = 128  # TPU lane width (last dim)
SUB = 8     # f32 sublane width (second-to-last dim)


def _round_up(n, m):
    return ((n + m - 1) // m) * m


def _make_kernel(state_dim, r_pad, n_pad, action_dim, compute_dtype):
    """Kernel closure with static dims.

    x_ref:   (TB, state_dim)       narrow batch tile (compute dtype)
    w_ref:   (3, r_pad, n_pad)     packed weight slab (compute dtype), VMEM-resident
    b_ref:   (3, 1, n_pad)         packed biases (f32), VMEM-resident
    out_ref: (TB, action_dim)      narrow f32 output tile
    """

    def kernel(x_ref, w_ref, b_ref, out_ref):
        def layer(h, idx, k):
            # Static row-slice of the slab selects the real contraction width;
            # it is a no-op when k == r_pad. Bias add is a free VPU broadcast.
            w = w_ref[idx] if k == r_pad else w_ref[idx, :k, :]
            return jnp.dot(h, w, preferred_element_type=jnp.float32) + b_ref[idx]

        h = jnp.maximum(layer(x_ref[...], 0, state_dim), 0.0).astype(compute_dtype)
        h = jnp.maximum(layer(h, 1, n_pad), 0.0).astype(compute_dtype)
        y = layer(h, 2, n_pad)                      # (TB, n_pad) f32
        out_ref[...] = y[:, :action_dim].astype(out_ref.dtype)

    return kernel


def pack_params(params, state_dim, action_dim, hidden_dim, compute_dtype=jnp.float32):
    """Build the packed slabs ONCE (call when params change, not per forward).

    Returns:
      w_slab: (3, R_pad, N_pad) compute_dtype, zero padded.
      b_slab: (3, 1, N_pad)     float32, zero padded.
    """
    n_pad = _round_up(max(hidden_dim, action_dim), LANE)
    r_pad = max(n_pad, _round_up(state_dim, SUB))

    w = jnp.zeros((3, r_pad, n_pad), jnp.float32)
    w = w.at[0, :state_dim, :hidden_dim].set(params["w1"])
    w = w.at[1, :hidden_dim, :hidden_dim].set(params["w2"])
    w = w.at[2, :hidden_dim, :action_dim].set(params["w3"])

    b = jnp.zeros((3, 1, n_pad), jnp.float32)
    b = b.at[0, 0, :hidden_dim].set(params["b1"].reshape(-1))
    b = b.at[1, 0, :hidden_dim].set(params["b2"].reshape(-1))
    b = b.at[2, 0, :action_dim].set(params["b3"].reshape(-1))
    return w.astype(compute_dtype), b


def qnetwork_forward(x, w_slab, b_slab, *, state_dim, action_dim):
    """x: [B, state_dim] float. Returns [B, action_dim] float32.

    Intended to be wrapped in jax.jit(static_argnames=("state_dim","action_dim"))
    so the batch pad / slice / pallas_call dispatch as a single program.
    """
    assert x.shape[-1] == state_dim
    B = x.shape[0]
    _, r_pad, n_pad = w_slab.shape
    compute_dtype = w_slab.dtype
    x = x.astype(compute_dtype)

    # Batch tiling: multiple of 8 (f32 sublane). Small batches -> one tile
    # (pure overhead regime, don't split). Large batches -> big tiles (up to
    # 1024) with >= 2 grid steps so both v7x TensorCores get work.
    b8 = _round_up(max(B, SUB), SUB)
    if b8 <= 256:
        tb = b8
    else:
        tb = min(1024, _round_up((b8 + 1) // 2, SUB))
    b_pad = _round_up(b8, tb)
    if b_pad != B:
        x = jnp.pad(x, ((0, b_pad - B), (0, 0)))

    kernel = _make_kernel(state_dim, r_pad, n_pad, action_dim, compute_dtype)

    out = pl.pallas_call(
        kernel,
        out_shape=jax.ShapeDtypeStruct((b_pad, action_dim), jnp.float32),
        grid=(b_pad // tb,),
        in_specs=[
            # narrow batch tile, double-buffered across the grid
            pl.BlockSpec((tb, state_dim), lambda i: (i, 0)),
            # packed weight slab, constant block index -> fetched once, VMEM-resident
            pl.BlockSpec((3, r_pad, n_pad), lambda i: (0, 0, 0)),
            # packed biases, constant block index -> VMEM-resident
            pl.BlockSpec((3, 1, n_pad), lambda i: (0, 0, 0)),
        ],
        # narrow output block (last dim == full array dim): tiny HBM writeback
        out_specs=pl.BlockSpec((tb, action_dim), lambda i: (i, 0)),
        compiler_params=pltpu.CompilerParams(
            dimension_semantics=("parallel",),  # batch axis shards across TCs
        ),
    )(x, w_slab, b_slab)

    return out[:B]


def init_params(key, state_dim, action_dim, hidden_dim):
    """Deterministic synthetic init matching nn.Linear shapes (stored as [in, out])."""
    ks = jax.random.split(key, 6)

    def linear(kw, kb, fan_in, fan_out):
        bound = 1.0 / jnp.sqrt(fan_in)
        w = jax.random.uniform(kw, (fan_in, fan_out), jnp.float32, -bound, bound)
        b = jax.random.uniform(kb, (fan_out,), jnp.float32, -bound, bound)
        return w, b

    w1, b1 = linear(ks[0], ks[1], state_dim, hidden_dim)
    w2, b2 = linear(ks[2], ks[3], hidden_dim, hidden_dim)
    w3, b3 = linear(ks[4], ks[5], hidden_dim, action_dim)
    return {"w1": w1, "b1": b1, "w2": w2, "b2": b2, "w3": w3, "b3": b3}


if __name__ == "__main__":
    key = jax.random.PRNGKey(0)
    k_x, k_p = jax.random.split(key)

    # Flappy-bird style shapes: state=12, actions=2, hidden=32, batch=8.
    batch, state_dim, action_dim, hidden_dim = 8, 12, 2, 32

    x = jax.random.normal(k_x, (batch, state_dim), jnp.float32)
    params = init_params(k_p, state_dim, action_dim, hidden_dim)

    # Pure-JAX reference.
    h1 = jnp.maximum(x @ params["w1"] + params["b1"], 0.0)
    h2 = jnp.maximum(h1 @ params["w2"] + params["b2"], 0.0)
    ref = h2 @ params["w3"] + params["b3"]

    fwd = jax.jit(qnetwork_forward, static_argnames=("state_dim", "action_dim"))

    # f32 compute path (strict correctness check).
    w32, b32 = pack_params(params, state_dim, action_dim, hidden_dim, jnp.float32)
    out32 = jax.block_until_ready(
        fwd(x, w32, b32, state_dim=state_dim, action_dim=action_dim)
    )
    assert out32.shape == (batch, action_dim)
    assert jnp.allclose(out32, ref, atol=1e-5, rtol=1e-5)

    # bf16 compute path (native-MXU fast path on v6e/v7x), relaxed tolerance.
    wbf, bbf = pack_params(params, state_dim, action_dim, hidden_dim, jnp.bfloat16)
    outbf = jax.block_until_ready(
        fwd(x, wbf, bbf, state_dim=state_dim, action_dim=action_dim)
    )
    assert outbf.shape == (batch, action_dim)
    assert jnp.allclose(outbf, ref, atol=5e-2, rtol=5e-2)

    print("KERNEL_OK")
</pallas_src>

<mosaic_0001>
module attributes {stable_mosaic.version = 11 : i64} {
  func.func @kernel(%arg0: i32, %arg1: memref<8x12xf32, #tpu.memory_space<vmem>>, %arg2: memref<3x128x128xf32, #tpu.memory_space<vmem>>, %arg3: memref<3x1x128xf32, #tpu.memory_space<vmem>>, %arg4: memref<8x2xf32, #tpu.memory_space<vmem>>) attributes {dimension_semantics = [#tpu.dimension_semantics<parallel>], iteration_bounds = array<i64: 1>, scalar_prefetch = 0 : i64, scratch_operands = 0 : i64, tpu.core_type = #tpu.core_type<tc>, window_params = [{transform_indices = @transform_0, window_bounds = array<i64: 8, 12>}, {pipeline_mode = #tpu.pipeline_mode<synchronous>, transform_indices = @transform_1, window_bounds = array<i64: 3, 128, 128>}, {pipeline_mode = #tpu.pipeline_mode<synchronous>, transform_indices = @transform_2, window_bounds = array<i64: 3, 1, 128>}, {transform_indices = @transform_3, window_bounds = array<i64: 8, 2>}]} {
    %c0 = arith.constant 0 : index
    %c0_0 = arith.constant 0 : index
    %0 = vector.load %arg1[%c0, %c0_0] : memref<8x12xf32, #tpu.memory_space<vmem>>, vector<8x12xf32>
    %c0_1 = arith.constant 0 : index
    %c0_2 = arith.constant 0 : index
    %c0_3 = arith.constant 0 : index
    %1 = vector.load %arg2[%c0_1, %c0_2, %c0_3] : memref<3x128x128xf32, #tpu.memory_space<vmem>>, vector<1x12x128xf32>
    %2 = vector.shape_cast %1 : vector<1x12x128xf32> to vector<12x128xf32>
    %cst = arith.constant dense<0.000000e+00> : vector<8x128xf32>
    %3 = tpu.matmul %0, %2, %cst {dimension_numbers = #tpu.dot_dimension_numbers<[1], [0], [0], [1], [0, 0, 1, 1], [], []>} : vector<8x12xf32>, vector<12x128xf32>, vector<8x128xf32> -> vector<8x128xf32>
    %c0_4 = arith.constant 0 : index
    %c0_5 = arith.constant 0 : index
    %c0_6 = arith.constant 0 : index
    %4 = vector.load %arg3[%c0_4, %c0_5, %c0_6] : memref<3x1x128xf32, #tpu.memory_space<vmem>>, vector<1x1x128xf32>
    %5 = vector.shape_cast %4 : vector<1x1x128xf32> to vector<1x128xf32>
    %6 = vector.broadcast %5 : vector<1x128xf32> to vector<8x128xf32>
    %7 = arith.addf %3, %6 : vector<8x128xf32>
    %cst_7 = arith.constant 0.000000e+00 : f32
    %8 = vector.broadcast %cst_7 : f32 to vector<8x128xf32>
    %9 = arith.maximumf %7, %8 : vector<8x128xf32>
    %c1 = arith.constant 1 : index
    %c0_8 = arith.constant 0 : index
    %c0_9 = arith.constant 0 : index
    %10 = vector.load %arg2[%c1, %c0_8, %c0_9] : memref<3x128x128xf32, #tpu.memory_space<vmem>>, vector<1x128x128xf32>
    %11 = vector.shape_cast %10 : vector<1x128x128xf32> to vector<128x128xf32>
    %cst_10 = arith.constant dense<0.000000e+00> : vector<8x128xf32>
    %12 = tpu.matmul %9, %11, %cst_10 {dimension_numbers = #tpu.dot_dimension_numbers<[1], [0], [0], [1], [0, 0, 1, 1], [], []>} : vector<8x128xf32>, vector<128x128xf32>, vector<8x128xf32> -> vector<8x128xf32>
    %c1_11 = arith.constant 1 : index
    %c0_12 = arith.constant 0 : index
    %c0_13 = arith.constant 0 : index
    %13 = vector.load %arg3[%c1_11, %c0_12, %c0_13] : memref<3x1x128xf32, #tpu.memory_space<vmem>>, vector<1x1x128xf32>
    %14 = vector.shape_cast %13 : vector<1x1x128xf32> to vector<1x128xf32>
    %15 = vector.broadcast %14 : vector<1x128xf32> to vector<8x128xf32>
    %16 = arith.addf %12, %15 : vector<8x128xf32>
    %cst_14 = arith.constant 0.000000e+00 : f32
    %17 = vector.broadcast %cst_14 : f32 to vector<8x128xf32>
    %18 = arith.maximumf %16, %17 : vector<8x128xf32>
    %c2 = arith.constant 2 : index
    %c0_15 = arith.constant 0 : index
    %c0_16 = arith.constant 0 : index
    %19 = vector.load %arg2[%c2, %c0_15, %c0_16] : memref<3x128x128xf32, #tpu.memory_space<vmem>>, vector<1x128x128xf32>
    %20 = vector.shape_cast %19 : vector<1x128x128xf32> to vector<128x128xf32>
    %cst_17 = arith.constant dense<0.000000e+00> : vector<8x128xf32>
    %21 = tpu.matmul %18, %20, %cst_17 {dimension_numbers = #tpu.dot_dimension_numbers<[1], [0], [0], [1], [0, 0, 1, 1], [], []>} : vector<8x128xf32>, vector<128x128xf32>, vector<8x128xf32> -> vector<8x128xf32>
    %c2_18 = arith.constant 2 : index
    %c0_19 = arith.constant 0 : index
    %c0_20 = arith.constant 0 : index
    %22 = vector.load %arg3[%c2_18, %c0_19, %c0_20] : memref<3x1x128xf32, #tpu.memory_space<vmem>>, vector<1x1x128xf32>
    %23 = vector.shape_cast %22 : vector<1x1x128xf32> to vector<1x128xf32>
    %24 = vector.broadcast %23 : vector<1x128xf32> to vector<8x128xf32>
    %25 = arith.addf %21, %24 : vector<8x128xf32>
    %26 = vector.extract_strided_slice %25 {offsets = [0, 0], sizes = [8, 2], strides = [1, 1]} : vector<8x128xf32> to vector<8x2xf32>
    %c0_21 = arith.constant 0 : index
    %c0_22 = arith.constant 0 : index
    %27 = vector.load %arg4[%c0_21, %c0_22] : memref<8x2xf32, #tpu.memory_space<vmem>>, vector<8x2xf32>
    tpu.vector_store %arg4[%c0_21, %c0_22], %26 {strides = array<i32>} : memref<8x2xf32, #tpu.memory_space<vmem>>, vector<8x2xf32>,
    return
  }
  func.func @transform_0(%arg0: i32) -> (i32, i32) {
    %c0_i32 = arith.constant 0 : i32
    %c0_i32_0 = arith.constant 0 : i32
    return %arg0, %c0_i32 : i32, i32
  }
  func.func @transform_1(%arg0: i32) -> (i32, i32, i32) {
    %c0_i32 = arith.constant 0 : i32
    %c0_i32_0 = arith.constant 0 : i32
    %c0_i32_1 = arith.constant 0 : i32
    %c0_i32_2 = arith.constant 0 : i32
    return %c0_i32, %c0_i32_0, %c0_i32_1 : i32, i32, i32
  }
  func.func @transform_2(%arg0: i32) -> (i32, i32, i32) {
    %c0_i32 = arith.constant 0 : i32
    %c0_i32_0 = arith.constant 0 : i32
    %c0_i32_1 = arith.constant 0 : i32
    %c0_i32_2 = arith.constant 0 : i32
    return %c0_i32, %c0_i32_0, %c0_i32_1 : i32, i32, i32
  }
  func.func @transform_3(%arg0: i32) -> (i32, i32) {
    %c0_i32 = arith.constant 0 : i32
    %c0_i32_0 = arith.constant 0 : i32
    return %arg0, %c0_i32 : i32, i32
  }
}

</mosaic_0001>

<llo_original>
// kernel: qnetwork_forward.1
$region0: #{qnetwork_forward.1}
  #allocation0 [shape = 'u32[]', space=smem, size = 0x4, offset = 0x4, fixed_abs, tag = 'smem constant byte address 0x4 - core index']
  #allocation1 [shape = 'u32[144,128]{1,0:T(1,128)}', space=vmem, size = 0x12000, scoped, tag = 'internal scratch']
  %s0 = inlined_call_operand.hbm [shape: f32[8,12], index: 0, kind: input, shape index: {}]
  %s1 = inlined_call_operand.hbm [shape: f32[3,128,128], index: 1, kind: input, shape index: {}]
  %s2 = inlined_call_operand.vmem [shape: f32[3,1,128], index: 2, kind: input, shape index: {}]
  %s3 = inlined_call_operand.vmem [shape: f32[8,2], index: 3, kind: output, shape index: {}]
  %s4 = sld [smem:[#allocation0]]
  $region30: #{qnetwork_forward.1} parent=0
    _
  %s6 = ssub.s32 1, %s4
  %s7 = scalar_select 0, %s6, %s4
  $region1: #{qnetwork_forward.1} parent=0
    #allocation2 [shape = 'u8[4096]{0}', space=vmem, size = 0x1000, scoped, tag = 'input window, operand 0, single buffered']
    #allocation3 [shape = 's32[1]{0}', space=sflag, size = 0x4, scoped, tag = 'scoped memory for qnetwork_forward.1']
    #allocation4 [shape = 'u8[196608]{0}', space=vmem, size = 0x30000, scoped, tag = 'input window, operand 1, single buffered']
    #allocation5 [shape = 's32[1]{0}', space=sflag, size = 0x4, scoped, tag = 'scoped memory for qnetwork_forward.1']
    %8 = vsyncpa [#allocation3], 0
    %9 = vsyncpa [#allocation5], 0
    // Predicated region
    $region2: #{qnetwork_forward.1} parent=1 // pred_check
      _
    $region3: #{qnetwork_forward.1} parent=1 // pred_check_branch
      %11 = sbr.rel (0) target = $region5
    $region4: #{qnetwork_forward.1} parent=1 // pred_region
      %s13 = ssub.s32 128, 128
      %14 = vsyncadd [#allocation3], %s13
      %s16 = sshll.u32 [#allocation2], 4
      %s17 = int_to_ptr.vmem [resolvable:$true] %s16
      %19 = dma.hbm_to_vmem [thread:$0]  %s0, 128, %s17, [#allocation3]
    $region5: #{qnetwork_forward.1} parent=1 // pred_fallthru
      _
    // Predicated region
    $region6: #{qnetwork_forward.1} parent=1 // pred_check
      _
    $region7: #{qnetwork_forward.1} parent=1 // pred_check_branch
      %21 = sbr.rel (0) target = $region9
    $region8: #{qnetwork_forward.1} parent=1 // pred_region
      %s23 = ssub.s32 6144, 6144
      %24 = vsyncadd [#allocation5], %s23
      %s25 = sshll.u32 [#allocation4], 4
      %s26 = int_to_ptr.vmem [resolvable:$true] %s25
      %31 = dma.hbm_to_vmem [thread:$0]  %s1, 6144, %s26, [#allocation5], 128, 128, 8
    $region9: #{qnetwork_forward.1} parent=1 // pred_fallthru
      _
    // Predicated region
    $region10: #{qnetwork_forward.1} parent=1 // pred_check
      _
    $region11: #{qnetwork_forward.1} parent=1 // pred_check_branch
      %33 = sbr.rel (0) target = $region13
    $region12: #{qnetwork_forward.1} parent=1 // pred_region
      _
    $region13: #{qnetwork_forward.1} parent=1 // pred_fallthru
      _
    // Predicated region
    $region14: #{qnetwork_forward.1} parent=1 // pred_check
      _
    $region15: #{qnetwork_forward.1} parent=1 // pred_check_branch
      %35 = sbr.rel (0) target = $region17
    $region16: #{qnetwork_forward.1} parent=1 // pred_region
      %36 = dma.done [#allocation3], 128
    $region17: #{qnetwork_forward.1} parent=1 // pred_fallthru
      _
    // Predicated region
    $region18: #{qnetwork_forward.1} parent=1 // pred_check
      _
    $region19: #{qnetwork_forward.1} parent=1 // pred_check_branch
      %38 = sbr.rel (0) target = $region21
    $region20: #{qnetwork_forward.1} parent=1 // pred_region
      %39 = dma.done [#allocation5], 6144
    $region21: #{qnetwork_forward.1} parent=1 // pred_fallthru
      _
    %v40 = vld [vmem:[#allocation2] sm:$0xff]
    %v41 = vld [vmem:[#allocation4] sm:$0xff]
    %v42 = vld [vmem:[#allocation4 + $0x8] sm:$0xf]
    %v43 = vld [vmem:[%s2] sm:$0x1]
    %v45 = vlaneseq
    %v46 = vshrl.u32 %v45, 7
    %v47 = vsub.s32 0, %v46
    %v48 = vrot.slane %v43, %v47
    %vm50 = vcmask 97280
    %v52 = vsel %vm50, %v40, 0
    %vm54 = vcmask 1043456
    %v56 = vsel %vm54, %v42, 0
    %58 = vmatprep.subr.mxu0 0.0
    %59 = vmatpush1.msra.mxu0 %v41
    %60 = vmatprep.subr.mxu0 0.0
    %61 = vmatpush1.msra.mxu0 %v56
    %62 = vmatprep.subr.mxu0 0.0
    %63 = vmatpush1.msra.mxu0 0.0
    %64 = vmatprep.subr.mxu0 0.0
    %65 = vmatpush1.msra.mxu0 0.0
    %66 = vmatprep.subr.mxu0 0.0
    %67 = vmatpush1.msra.mxu0 0.0
    %68 = vmatprep.subr.mxu0 0.0
    %69 = vmatpush1.msra.mxu0 0.0
    %70 = vmatprep.subr.mxu0 0.0
    %71 = vmatpush1.msra.mxu0 0.0
    %72 = vmatprep.subr.mxu0 0.0
    %73 = vmatpush1.msra.mxu0 0.0
    %74 = vmatprep.subr.mxu0 0.0
    %75 = vmatpush1.msra.mxu0 0.0
    %76 = vmatprep.subr.mxu0 0.0
    %77 = vmatpush1.msra.mxu0 0.0
    %78 = vmatprep.subr.mxu0 0.0
    %79 = vmatpush1.msra.mxu0 0.0
    %80 = vmatprep.subr.mxu0 0.0
    %81 = vmatpush1.msra.mxu0 0.0
    %82 = vmatprep.subr.mxu0 0.0
    %83 = vmatpush1.msra.mxu0 0.0
    %84 = vmatprep.subr.mxu0 0.0
    %85 = vmatpush1.msra.mxu0 0.0
    %86 = vmatprep.subr.mxu0 0.0
    %87 = vmatpush1.msra.mxu0 0.0
    %88 = vmatprep.subr.mxu0 0.0
    %89 = vmatpush1.msra.mxu0 0.0
    %90 = vmatprep.subr.mxu0 0.0
    %91 = vmatpush1.msra.mxu0 0.0
    %92 = vmatprep.subr.mxu0 0.0
    %93 = vmatpush1.msra.mxu0 0.0
    %94 = vmatprep.subr.mxu0 0.0
    %95 = vmatpush1.msra.mxu0 0.0
    %96 = vmatprep.subr.mxu0 0.0
    %97 = vmatpush1.msra.mxu0 0.0
    %98 = vmatprep.subr.mxu0 0.0
    %99 = vmatpush1.msra.mxu0 0.0
    %100 = vmatprep.subr.mxu0 0.0
    %101 = vmatpush1.msra.mxu0 0.0
    %102 = vmatprep.subr.mxu0 0.0
    %103 = vmatpush1.msra.mxu0 0.0
    %104 = vmatprep.subr.mxu0 0.0
    %105 = vmatpush1.msra.mxu0 0.0
    %106 = vmatprep.subr.mxu0 0.0
    %107 = vmatpush1.msra.mxu0 0.0
    %108 = vmatprep.subr.mxu0 0.0
    %109 = vmatpush1.msra.mxu0 0.0
    %110 = vmatprep.subr.mxu0 0.0
    %111 = vmatpush1.msra.mxu0 0.0
    %112 = vmatprep.subr.mxu0 0.0
    %113 = vmatpush1.msra.mxu0 0.0
    %114 = vmatprep.subr.mxu0 0.0
    %115 = vmatpush1.msra.mxu0 0.0
    %116 = vmatprep.subr.mxu0 0.0
    %117 = vmatpush1.msra.mxu0 0.0
    %118 = vmatprep.subr.mxu0 0.0
    %119 = vmatpush1.msra.mxu0 0.0
    %120 = vmatprep.subr.mxu0 0.0
    %121 = vmatpush1.msra.mxu0 0.0
    %122 = vmatprep.mubr.f32.mxu0 0.0
    %123 = vmatmul.mubr.f32.gmra.mrb[0].mxu0 %v52
    %v124 = vpop.f32.mrb[0].mxu0
    %v125 = vadd.f32 %v48, %v124
    %v126 = vpop.f32.mrb[0].mxu0
    %127 = vdwg.mxu0
    %v128 = vmax.f32 %v125, 0.0
    %s129 = scalar_lea.vmem [#allocation4], 128
    %v130 = vld [vmem:[%s129] sm:$0xff]
    %v131 = vld [vmem:[%s129 + $0x8] sm:$0xff]
    %v132 = vld [vmem:[%s129 + $0x10] sm:$0xff]
    %v133 = vld [vmem:[%s129 + $0x18] sm:$0xff]
    %v134 = vld [vmem:[%s129 + $0x20] sm:$0xff]
    %v135 = vld [vmem:[%s129 + $0x28] sm:$0xff]
    %v136 = vld [vmem:[%s129 + $0x30] sm:$0xff]
    %v137 = vld [vmem:[%s129 + $0x38] sm:$0xff]
    %v138 = vld [vmem:[%s129 + $0x40] sm:$0xff]
    %v139 = vld [vmem:[%s129 + $0x48] sm:$0xff]
    %v140 = vld [vmem:[%s129 + $0x50] sm:$0xff]
    %v141 = vld [vmem:[%s129 + $0x58] sm:$0xff]
    %v142 = vld [vmem:[%s129 + $0x60] sm:$0xff]
    %v143 = vld [vmem:[%s129 + $0x68] sm:$0xff]
    %v144 = vld [vmem:[%s129 + $0x70] sm:$0xff]
    %v145 = vld [vmem:[%s129 + $0x78] sm:$0xff]
    %s146 = scalar_lea.vmem %s2, 1
    %v147 = vld [vmem:[%s146] sm:$0x1]
    %v149 = vlaneseq
    %v150 = vshrl.u32 %v149, 7
    %v151 = vsub.s32 0, %v150
    %v152 = vrot.slane %v147, %v151
    %154 = vmatprep.subr.mxu0 0.0
    %155 = vmatpush1.msra.mxu0 %v130
    %156 = vmatprep.subr.mxu0 0.0
    %157 = vmatpush1.msra.mxu0 %v131
    %158 = vmatprep.subr.mxu0 0.0
    %159 = vmatpush1.msra.mxu0 %v132
    %160 = vmatprep.subr.mxu0 0.0
    %161 = vmatpush1.msra.mxu0 %v133
    %162 = vmatprep.subr.mxu0 0.0
    %163 = vmatpush1.msra.mxu0 %v134
    %164 = vmatprep.subr.mxu0 0.0
    %165 = vmatpush1.msra.mxu0 %v135
    %166 = vmatprep.subr.mxu0 0.0
    %167 = vmatpush1.msra.mxu0 %v136
    %168 = vmatprep.subr.mxu0 0.0
    %169 = vmatpush1.msra.mxu0 %v137
    %170 = vmatprep.subr.mxu0 0.0
    %171 = vmatpush1.msra.mxu0 %v138
    %172 = vmatprep.subr.mxu0 0.0
    %173 = vmatpush1.msra.mxu0 %v139
    %174 = vmatprep.subr.mxu0 0.0
    %175 = vmatpush1.msra.mxu0 %v140
    %176 = vmatprep.subr.mxu0 0.0
    %177 = vmatpush1.msra.mxu0 %v141
    %178 = vmatprep.subr.mxu0 0.0
    %179 = vmatpush1.msra.mxu0 %v142
    %180 = vmatprep.subr.mxu0 0.0
    %181 = vmatpush1.msra.mxu0 %v143
    %182 = vmatprep.subr.mxu0 0.0
    %183 = vmatpush1.msra.mxu0 %v144
    %184 = vmatprep.subr.mxu0 0.0
    %185 = vmatpush1.msra.mxu0 %v145
    %186 = vmatprep.subr.mxu0 0.0
    %187 = vmatpush1.msra.mxu0 0.0
    %188 = vmatprep.subr.mxu0 0.0
    %189 = vmatpush1.msra.mxu0 0.0
    %190 = vmatprep.subr.mxu0 0.0
    %191 = vmatpush1.msra.mxu0 0.0
    %192 = vmatprep.subr.mxu0 0.0
    %193 = vmatpush1.msra.mxu0 0.0
    %194 = vmatprep.subr.mxu0 0.0
    %195 = vmatpush1.msra.mxu0 0.0
    %196 = vmatprep.subr.mxu0 0.0
    %197 = vmatpush1.msra.mxu0 0.0
    %198 = vmatprep.subr.mxu0 0.0
    %199 = vmatpush1.msra.mxu0 0.0
    %200 = vmatprep.subr.mxu0 0.0
    %201 = vmatpush1.msra.mxu0 0.0
    %202 = vmatprep.subr.mxu0 0.0
    %203 = vmatpush1.msra.mxu0 0.0
    %204 = vmatprep.subr.mxu0 0.0
    %205 = vmatpush1.msra.mxu0 0.0
    %206 = vmatprep.subr.mxu0 0.0
    %207 = vmatpush1.msra.mxu0 0.0
    %208 = vmatprep.subr.mxu0 0.0
    %209 = vmatpush1.msra.mxu0 0.0
    %210 = vmatprep.subr.mxu0 0.0
    %211 = vmatpush1.msra.mxu0 0.0
    %212 = vmatprep.subr.mxu0 0.0
    %213 = vmatpush1.msra.mxu0 0.0
    %214 = vmatprep.subr.mxu0 0.0
    %215 = vmatpush1.msra.mxu0 0.0
    %216 = vmatprep.subr.mxu0 0.0
    %217 = vmatpush1.msra.mxu0 0.0
    %218 = vmatprep.mubr.f32.mxu0 0.0
    %219 = vmatmul.mubr.f32.gmra.mrb[0].mxu0 %v128
    %v220 = vpop.f32.mrb[0].mxu0
    %v221 = vadd.f32 %v152, %v220
    %v222 = vpop.f32.mrb[0].mxu0
    %223 = vdwg.mxu0
    %v224 = vmax.f32 %v221, 0.0
    %s225 = scalar_lea.vmem [#allocation4], 256
    %v226 = vld [vmem:[%s225] sm:$0xff]
    %v227 = vld [vmem:[%s225 + $0x8] sm:$0xff]
    %v228 = vld [vmem:[%s225 + $0x10] sm:$0xff]
    %v229 = vld [vmem:[%s225 + $0x18] sm:$0xff]
    %v230 = vld [vmem:[%s225 + $0x20] sm:$0xff]
    %v231 = vld [vmem:[%s225 + $0x28] sm:$0xff]
    %v232 = vld [vmem:[%s225 + $0x30] sm:$0xff]
    %v233 = vld [vmem:[%s225 + $0x38] sm:$0xff]
    %v234 = vld [vmem:[%s225 + $0x40] sm:$0xff]
    %v235 = vld [vmem:[%s225 + $0x48] sm:$0xff]
    %v236 = vld [vmem:[%s225 + $0x50] sm:$0xff]
    %v237 = vld [vmem:[%s225 + $0x58] sm:$0xff]
    %v238 = vld [vmem:[%s225 + $0x60] sm:$0xff]
    %v239 = vld [vmem:[%s225 + $0x68] sm:$0xff]
    %v240 = vld [vmem:[%s225 + $0x70] sm:$0xff]
    %v241 = vld [vmem:[%s225 + $0x78] sm:$0xff]
    %s242 = scalar_lea.vmem %s2, 2
    %v243 = vld [vmem:[%s242] sm:$0x1]
    %v245 = vlaneseq
    %v246 = vshrl.u32 %v245, 7
    %v247 = vsub.s32 0, %v246
    %v248 = vrot.slane %v243, %v247
    %250 = vmatprep.subr.mxu0 0.0
    %251 = vmatpush1.msra.mxu0 %v226
    %252 = vmatprep.subr.mxu0 0.0
    %253 = vmatpush1.msra.mxu0 %v227
    %254 = vmatprep.subr.mxu0 0.0
    %255 = vmatpush1.msra.mxu0 %v228
    %256 = vmatprep.subr.mxu0 0.0
    %257 = vmatpush1.msra.mxu0 %v229
    %258 = vmatprep.subr.mxu0 0.0
    %259 = vmatpush1.msra.mxu0 %v230
    %260 = vmatprep.subr.mxu0 0.0
    %261 = vmatpush1.msra.mxu0 %v231
    %262 = vmatprep.subr.mxu0 0.0
    %263 = vmatpush1.msra.mxu0 %v232
    %264 = vmatprep.subr.mxu0 0.0
    %265 = vmatpush1.msra.mxu0 %v233
    %266 = vmatprep.subr.mxu0 0.0
    %267 = vmatpush1.msra.mxu0 %v234
    %268 = vmatprep.subr.mxu0 0.0
    %269 = vmatpush1.msra.mxu0 %v235
    %270 = vmatprep.subr.mxu0 0.0
    %271 = vmatpush1.msra.mxu0 %v236
    %272 = vmatprep.subr.mxu0 0.0
    %273 = vmatpush1.msra.mxu0 %v237
    %274 = vmatprep.subr.mxu0 0.0
    %275 = vmatpush1.msra.mxu0 %v238
    %276 = vmatprep.subr.mxu0 0.0
    %277 = vmatpush1.msra.mxu0 %v239
    %278 = vmatprep.subr.mxu0 0.0
    %279 = vmatpush1.msra.mxu0 %v240
    %280 = vmatprep.subr.mxu0 0.0
    %281 = vmatpush1.msra.mxu0 %v241
    %282 = vmatprep.subr.mxu0 0.0
    %283 = vmatpush1.msra.mxu0 0.0
    %284 = vmatprep.subr.mxu0 0.0
    %285 = vmatpush1.msra.mxu0 0.0
    %286 = vmatprep.subr.mxu0 0.0
    %287 = vmatpush1.msra.mxu0 0.0
    %288 = vmatprep.subr.mxu0 0.0
    %289 = vmatpush1.msra.mxu0 0.0
    %290 = vmatprep.subr.mxu0 0.0
    %291 = vmatpush1.msra.mxu0 0.0
    %292 = vmatprep.subr.mxu0 0.0
    %293 = vmatpush1.msra.mxu0 0.0
    %294 = vmatprep.subr.mxu0 0.0
    %295 = vmatpush1.msra.mxu0 0.0
    %296 = vmatprep.subr.mxu0 0.0
    %297 = vmatpush1.msra.mxu0 0.0
    %298 = vmatprep.subr.mxu0 0.0
    %299 = vmatpush1.msra.mxu0 0.0
    %300 = vmatprep.subr.mxu0 0.0
    %301 = vmatpush1.msra.mxu0 0.0
    %302 = vmatprep.subr.mxu0 0.0
    %303 = vmatpush1.msra.mxu0 0.0
    %304 = vmatprep.subr.mxu0 0.0
    %305 = vmatpush1.msra.mxu0 0.0
    %306 = vmatprep.subr.mxu0 0.0
    %307 = vmatpush1.msra.mxu0 0.0
    %308 = vmatprep.subr.mxu0 0.0
    %309 = vmatpush1.msra.mxu0 0.0
    %310 = vmatprep.subr.mxu0 0.0
    %311 = vmatpush1.msra.mxu0 0.0
    %312 = vmatprep.subr.mxu0 0.0
    %313 = vmatpush1.msra.mxu0 0.0
    %314 = vmatprep.mubr.f32.mxu0 0.0
    %315 = vmatmul.mubr.f32.gmra.mrb[0].mxu0 %v224
    %v316 = vpop.f32.mrb[0].mxu0
    %v317 = vadd.f32 %v248, %v316
    %v318 = vpop.f32.mrb[0].mxu0
    %319 = vdwg.mxu0
    %vm320 = vcmask 15360
    %321 = vst.msk [vmem:[%s3] sm:$0xff] %vm320, %v317
    // Predicated region
    $region22: #{qnetwork_forward.1} parent=1 // pred_check
      _
    $region23: #{qnetwork_forward.1} parent=1 // pred_check_branch
      %323 = sbr.rel (0) target = $region25
    $region24: #{qnetwork_forward.1} parent=1 // pred_region
      _
    $region25: #{qnetwork_forward.1} parent=1 // pred_fallthru
      _
    // Predicated region
    $region26: #{qnetwork_forward.1} parent=1 // pred_check
      _
    $region27: #{qnetwork_forward.1} parent=1 // pred_check_branch
      %325 = sbr.rel (0) target = $region29
    $region28: #{qnetwork_forward.1} parent=1 // pred_region
      _
    $region29: #{qnetwork_forward.1} parent=1 // pred_fallthru
      _
    %326 = vsyncpa [#allocation3], 1
    %327 = vsyncpa [#allocation5], 1

</llo_original>
